<compile_context>
chip_gen: v5e
topology: v5e:2x2
jax: 0.10.0
libtpu: 0.0.40
codegen_flags: <defaults>
</compile_context>

<pallas_src>
import jax
import jax.numpy as jnp
from jax.experimental import pallas as pl
from jax.experimental.pallas import tpu as pltpu


def _round_up(n, m):
    return ((n + m - 1) // m) * m


# ----------------------------- Pallas kernel -------------------------------
def _roi_head_kernel(x_ref,
                     w6_ref, b6_ref,
                     w7_ref, b7_ref,
                     wp_ref, bp_ref,
                     out_ref):
    """Fused TwoMLPHead + FastRCNNPredictor for one tile of RoIs.

    x: [TR, Fp] (bf16) -> fc6 [Fp,Hp] + ReLU -> fc7 [Hp,Hp] + ReLU
                        -> fused (cls_score | bbox_pred) [Hp, OUTp]
    All matmuls are bf16 operands with fp32 MXU accumulation; bias adds and
    ReLU run in fp32.  The single output block is 128-lane dense.
    """
    # fc6
    h = jnp.dot(x_ref[...], w6_ref[...], preferred_element_type=jnp.float32)
    h = jnp.maximum(h + b6_ref[...], 0.0)
    # fc7 (feed bf16 back into the MXU)
    h = jnp.dot(h.astype(jnp.bfloat16), w7_ref[...],
                preferred_element_type=jnp.float32)
    h = jnp.maximum(h + b7_ref[...], 0.0)
    # fused cls_score | bbox_pred head -> one lane-dense store
    out = jnp.dot(h.astype(jnp.bfloat16), wp_ref[...],
                  preferred_element_type=jnp.float32)
    out_ref[...] = out + bp_ref[...]


# ------------------------------- wrapper ------------------------------------
def roi_box_head_predictor(pooled_feats, params, *, roi_tile=128):
    """pooled_feats: [R, C, 7, 7] float32 (NCHW RoIAlign output).

    Returns (class_logits [R, num_classes], box_regression [R, 4*num_classes]),
    matching torchvision's roi_heads.box_head + box_predictor semantics.
    """
    R = pooled_feats.shape[0]
    # glue: flatten exactly like torch .flatten(start_dim=1) on NCHW
    x = pooled_feats.reshape(R, -1)
    F = x.shape[1]

    w6, b6, w7, b7, wc, bc, wb, bb = params
    H = w6.shape[1]
    NC = wc.shape[1]
    OUT = 5 * NC                       # NC (scores) + 4*NC (bbox deltas)

    # Lane/sublane-aligned padded sizes.
    F_pad = _round_up(F, 128)
    H_pad = _round_up(H, 128)
    OUT_pad = _round_up(OUT, 128)
    R_pad = _round_up(R, roi_tile)

    bf = jnp.bfloat16
    # --- glue: zero-pad to aligned shapes, fuse the two heads, cast to bf16 --
    xp = jnp.zeros((R_pad, F_pad), bf).at[:R, :F].set(x.astype(bf))
    w6p = jnp.zeros((F_pad, H_pad), bf).at[:F, :H].set(w6.astype(bf))
    b6p = jnp.zeros((1, H_pad), jnp.float32).at[:, :H].set(b6)
    w7p = jnp.zeros((H_pad, H_pad), bf).at[:H, :H].set(w7.astype(bf))
    b7p = jnp.zeros((1, H_pad), jnp.float32).at[:, :H].set(b7)
    wp = jnp.zeros((H_pad, OUT_pad), bf)
    wp = wp.at[:H, :NC].set(wc.astype(bf))
    wp = wp.at[:H, NC:OUT].set(wb.astype(bf))
    bp = jnp.zeros((1, OUT_pad), jnp.float32)
    bp = bp.at[:, :NC].set(bc)
    bp = bp.at[:, NC:OUT].set(bb)

    grid = (R_pad // roi_tile,)
    rows = lambda i: (i, 0)            # RoI tiles march down the row axis
    const = lambda i: (0, 0)           # weights/biases: same full block every step

    flops = 2 * R_pad * (F_pad * H_pad + H_pad * H_pad + H_pad * OUT_pad)
    bytes_accessed = (
        (R_pad * F_pad + F_pad * H_pad + H_pad * H_pad + H_pad * OUT_pad) * 2
        + (H_pad + H_pad + OUT_pad) * 4
        + R_pad * OUT_pad * 4)

    out = pl.pallas_call(
        _roi_head_kernel,
        out_shape=jax.ShapeDtypeStruct((R_pad, OUT_pad), jnp.float32),
        grid_spec=pltpu.PrefetchScalarGridSpec(
            num_scalar_prefetch=0,
            grid=grid,
            in_specs=[
                pl.BlockSpec((roi_tile, F_pad), rows),    # x tile
                pl.BlockSpec((F_pad, H_pad), const),      # fc6 weight
                pl.BlockSpec((1, H_pad), const),          # fc6 bias
                pl.BlockSpec((H_pad, H_pad), const),      # fc7 weight
                pl.BlockSpec((1, H_pad), const),          # fc7 bias
                pl.BlockSpec((H_pad, OUT_pad), const),    # fused cls|bbox weight
                pl.BlockSpec((1, OUT_pad), const),        # fused cls|bbox bias
            ],
            out_specs=pl.BlockSpec((roi_tile, OUT_pad), rows),
        ),
        compiler_params=pltpu.CompilerParams(
            dimension_semantics=("parallel",)),           # shards across TCs on v7x
        cost_estimate=pl.CostEstimate(
            flops=flops, transcendentals=0, bytes_accessed=bytes_accessed),
    )(xp, w6p, b6p, w7p, b7p, wp, bp)

    # Slice the padded rows / garbage lanes back off.
    scores = out[:R, :NC]
    bbox = out[:R, NC:OUT]
    return scores, bbox


# ------------------------- deterministic parameters -------------------------
def make_params(key, in_features_flat, rep_size, num_classes):
    """Create TwoMLPHead + FastRCNNPredictor weights deterministically.

    PyTorch Linear stores weight as (out, in); we transpose to (in, out) so
    the kernel does plain row-major matmuls.
    """
    ks = jax.random.split(key, 8)

    def linear(kw, kb, n_in, n_out, scale):
        w = jax.random.normal(kw, (n_out, n_in), jnp.float32) * scale  # torch layout
        b = jax.random.normal(kb, (n_out,), jnp.float32) * scale
        return w.T, b.reshape(1, n_out)  # kernel layout

    w6, b6 = linear(ks[0], ks[1], in_features_flat, rep_size, 0.02)
    w7, b7 = linear(ks[2], ks[3], rep_size, rep_size, 0.02)
    wc, bc = linear(ks[4], ks[5], rep_size, num_classes, 0.02)
    wb, bb = linear(ks[6], ks[7], rep_size, 4 * num_classes, 0.02)
    return (w6, b6, w7, b7, wc, bc, wb, bb)


def reference(pooled_feats, params):
    """Pure-JAX reference with the same bf16-operand / fp32-accumulate math."""
    w6, b6, w7, b7, wc, bc, wb, bb = params
    bf = jnp.bfloat16
    x = pooled_feats.reshape(pooled_feats.shape[0], -1).astype(bf)
    h = jnp.maximum(
        jnp.dot(x, w6.astype(bf), preferred_element_type=jnp.float32) + b6, 0.0)
    h = jnp.maximum(
        jnp.dot(h.astype(bf), w7.astype(bf),
                preferred_element_type=jnp.float32) + b7, 0.0)
    hb = h.astype(bf)
    scores = jnp.dot(hb, wc.astype(bf), preferred_element_type=jnp.float32) + bc
    bbox = jnp.dot(hb, wb.astype(bf), preferred_element_type=jnp.float32) + bb
    return scores, bbox


# --------------------------------- driver -----------------------------------
if __name__ == "__main__":
    key = jax.random.PRNGKey(0)
    k_feat, k_params = jax.random.split(key)

    # Small, module-consistent shapes:
    #   len(concepts) = 4  -> num_classes = 5
    #   RoIAlign output:  R = 16 RoIs, C = 4 channels, 7x7 pool  -> F = 196
    #   representation_size (box_head hidden) = 32
    num_concepts = 4
    num_classes = num_concepts + 1
    R, C, P = 16, 4, 7
    rep_size = 32

    pooled_feats = jax.random.normal(k_feat, (R, C, P, P), jnp.float32)
    params = make_params(k_params, C * P * P, rep_size, num_classes)

    scores, bbox = roi_box_head_predictor(pooled_feats, params, roi_tile=128)
    scores = jax.block_until_ready(scores)
    bbox = jax.block_until_ready(bbox)

    ref_scores, ref_bbox = reference(pooled_feats, params)
    assert scores.shape == (R, num_classes)
    assert bbox.shape == (R, 4 * num_classes)
    assert jnp.allclose(scores, ref_scores, atol=2e-3, rtol=2e-2)
    assert jnp.allclose(bbox, ref_bbox, atol=2e-3, rtol=2e-2)

    print("KERNEL_OK")
</pallas_src>

<mosaic_0001>
module attributes {stable_mosaic.version = 11 : i64} {
  func.func @_roi_head_kernel(%arg0: i32, %arg1: memref<128x256xbf16, #tpu.memory_space<vmem>>, %arg2: memref<256x128xbf16, #tpu.memory_space<vmem>>, %arg3: memref<1x128xf32, #tpu.memory_space<vmem>>, %arg4: memref<128x128xbf16, #tpu.memory_space<vmem>>, %arg5: memref<1x128xf32, #tpu.memory_space<vmem>>, %arg6: memref<128x128xbf16, #tpu.memory_space<vmem>>, %arg7: memref<1x128xf32, #tpu.memory_space<vmem>>, %arg8: memref<128x128xf32, #tpu.memory_space<vmem>>) attributes {dimension_semantics = [#tpu.dimension_semantics<parallel>], iteration_bounds = array<i64: 1>, scalar_prefetch = 0 : i64, scratch_operands = 0 : i64, tpu.core_type = #tpu.core_type<tc>, window_params = [{transform_indices = @transform_0, window_bounds = array<i64: 128, 256>}, {pipeline_mode = #tpu.pipeline_mode<synchronous>, transform_indices = @transform_1, window_bounds = array<i64: 256, 128>}, {pipeline_mode = #tpu.pipeline_mode<synchronous>, transform_indices = @transform_2, window_bounds = array<i64: 1, 128>}, {pipeline_mode = #tpu.pipeline_mode<synchronous>, transform_indices = @transform_3, window_bounds = array<i64: 128, 128>}, {pipeline_mode = #tpu.pipeline_mode<synchronous>, transform_indices = @transform_4, window_bounds = array<i64: 1, 128>}, {pipeline_mode = #tpu.pipeline_mode<synchronous>, transform_indices = @transform_5, window_bounds = array<i64: 128, 128>}, {pipeline_mode = #tpu.pipeline_mode<synchronous>, transform_indices = @transform_6, window_bounds = array<i64: 1, 128>}, {transform_indices = @transform_7, window_bounds = array<i64: 128, 128>}]} {
    %c0 = arith.constant 0 : index
    %c0_0 = arith.constant 0 : index
    %0 = vector.load %arg1[%c0, %c0_0] : memref<128x256xbf16, #tpu.memory_space<vmem>>, vector<128x256xbf16>
    %c0_1 = arith.constant 0 : index
    %c0_2 = arith.constant 0 : index
    %1 = vector.load %arg2[%c0_1, %c0_2] : memref<256x128xbf16, #tpu.memory_space<vmem>>, vector<256x128xbf16>
    %cst = arith.constant dense<0.000000e+00> : vector<128x128xf32>
    %2 = tpu.matmul %0, %1, %cst {dimension_numbers = #tpu.dot_dimension_numbers<[1], [0], [0], [1], [0, 0, 1, 1], [], []>} : vector<128x256xbf16>, vector<256x128xbf16>, vector<128x128xf32> -> vector<128x128xf32>
    %c0_3 = arith.constant 0 : index
    %c0_4 = arith.constant 0 : index
    %3 = vector.load %arg3[%c0_3, %c0_4] : memref<1x128xf32, #tpu.memory_space<vmem>>, vector<1x128xf32>
    %4 = vector.broadcast %3 : vector<1x128xf32> to vector<128x128xf32>
    %5 = arith.addf %2, %4 : vector<128x128xf32>
    %cst_5 = arith.constant 0.000000e+00 : f32
    %6 = vector.broadcast %cst_5 : f32 to vector<128x128xf32>
    %7 = arith.maximumf %5, %6 : vector<128x128xf32>
    %8 = arith.truncf %7 : vector<128x128xf32> to vector<128x128xbf16>
    %c0_6 = arith.constant 0 : index
    %c0_7 = arith.constant 0 : index
    %9 = vector.load %arg4[%c0_6, %c0_7] : memref<128x128xbf16, #tpu.memory_space<vmem>>, vector<128x128xbf16>
    %cst_8 = arith.constant dense<0.000000e+00> : vector<128x128xf32>
    %10 = tpu.matmul %8, %9, %cst_8 {dimension_numbers = #tpu.dot_dimension_numbers<[1], [0], [0], [1], [0, 0, 1, 1], [], []>} : vector<128x128xbf16>, vector<128x128xbf16>, vector<128x128xf32> -> vector<128x128xf32>
    %c0_9 = arith.constant 0 : index
    %c0_10 = arith.constant 0 : index
    %11 = vector.load %arg5[%c0_9, %c0_10] : memref<1x128xf32, #tpu.memory_space<vmem>>, vector<1x128xf32>
    %12 = vector.broadcast %11 : vector<1x128xf32> to vector<128x128xf32>
    %13 = arith.addf %10, %12 : vector<128x128xf32>
    %cst_11 = arith.constant 0.000000e+00 : f32
    %14 = vector.broadcast %cst_11 : f32 to vector<128x128xf32>
    %15 = arith.maximumf %13, %14 : vector<128x128xf32>
    %16 = arith.truncf %15 : vector<128x128xf32> to vector<128x128xbf16>
    %c0_12 = arith.constant 0 : index
    %c0_13 = arith.constant 0 : index
    %17 = vector.load %arg6[%c0_12, %c0_13] : memref<128x128xbf16, #tpu.memory_space<vmem>>, vector<128x128xbf16>
    %cst_14 = arith.constant dense<0.000000e+00> : vector<128x128xf32>
    %18 = tpu.matmul %16, %17, %cst_14 {dimension_numbers = #tpu.dot_dimension_numbers<[1], [0], [0], [1], [0, 0, 1, 1], [], []>} : vector<128x128xbf16>, vector<128x128xbf16>, vector<128x128xf32> -> vector<128x128xf32>
    %c0_15 = arith.constant 0 : index
    %c0_16 = arith.constant 0 : index
    %19 = vector.load %arg7[%c0_15, %c0_16] : memref<1x128xf32, #tpu.memory_space<vmem>>, vector<1x128xf32>
    %20 = vector.broadcast %19 : vector<1x128xf32> to vector<128x128xf32>
    %21 = arith.addf %18, %20 : vector<128x128xf32>
    %c0_17 = arith.constant 0 : index
    %c0_18 = arith.constant 0 : index
    %22 = vector.load %arg8[%c0_17, %c0_18] : memref<128x128xf32, #tpu.memory_space<vmem>>, vector<128x128xf32>
    tpu.vector_store %arg8[%c0_17, %c0_18], %21 {strides = array<i32>} : memref<128x128xf32, #tpu.memory_space<vmem>>, vector<128x128xf32>,
    return
  }
  func.func @transform_0(%arg0: i32) -> (i32, i32) {
    %c0_i32 = arith.constant 0 : i32
    %c0_i32_0 = arith.constant 0 : i32
    return %arg0, %c0_i32 : i32, i32
  }
  func.func @transform_1(%arg0: i32) -> (i32, i32) {
    %c0_i32 = arith.constant 0 : i32
    %c0_i32_0 = arith.constant 0 : i32
    %c0_i32_1 = arith.constant 0 : i32
    return %c0_i32, %c0_i32_0 : i32, i32
  }
  func.func @transform_2(%arg0: i32) -> (i32, i32) {
    %c0_i32 = arith.constant 0 : i32
    %c0_i32_0 = arith.constant 0 : i32
    %c0_i32_1 = arith.constant 0 : i32
    return %c0_i32, %c0_i32_0 : i32, i32
  }
  func.func @transform_3(%arg0: i32) -> (i32, i32) {
    %c0_i32 = arith.constant 0 : i32
    %c0_i32_0 = arith.constant 0 : i32
    %c0_i32_1 = arith.constant 0 : i32
    return %c0_i32, %c0_i32_0 : i32, i32
  }
  func.func @transform_4(%arg0: i32) -> (i32, i32) {
    %c0_i32 = arith.constant 0 : i32
    %c0_i32_0 = arith.constant 0 : i32
    %c0_i32_1 = arith.constant 0 : i32
    return %c0_i32, %c0_i32_0 : i32, i32
  }
  func.func @transform_5(%arg0: i32) -> (i32, i32) {
    %c0_i32 = arith.constant 0 : i32
    %c0_i32_0 = arith.constant 0 : i32
    %c0_i32_1 = arith.constant 0 : i32
    return %c0_i32, %c0_i32_0 : i32, i32
  }
  func.func @transform_6(%arg0: i32) -> (i32, i32) {
    %c0_i32 = arith.constant 0 : i32
    %c0_i32_0 = arith.constant 0 : i32
    %c0_i32_1 = arith.constant 0 : i32
    return %c0_i32, %c0_i32_0 : i32, i32
  }
  func.func @transform_7(%arg0: i32) -> (i32, i32) {
    %c0_i32 = arith.constant 0 : i32
    %c0_i32_0 = arith.constant 0 : i32
    return %arg0, %c0_i32 : i32, i32
  }
}

</mosaic_0001>

<llo_original>
// kernel: tpu_custom_call.1
$region0: #{tpu_custom_call.1}
  #allocation0 [shape = 'u32[]', space=smem, size = 0x4, offset = 0x4, fixed_abs, tag = 'smem constant byte address 0x4 - core index']
  #allocation1 [shape = 'u32[72,128]{1,0:T(1,128)}', space=vmem, size = 0x9000, scoped, tag = 'internal scratch']
  %s0 = inlined_call_operand.hbm [shape: bf16[128,256], index: 0, kind: input, shape index: {}]
  %s1 = inlined_call_operand.hbm [shape: bf16[256,128], index: 1, kind: input, shape index: {}]
  %s2 = inlined_call_operand.vmem [shape: f32[1,128], index: 2, kind: input, shape index: {}]
  %s3 = inlined_call_operand.hbm [shape: bf16[128,128], index: 3, kind: input, shape index: {}]
  %s4 = inlined_call_operand.vmem [shape: f32[1,128], index: 4, kind: input, shape index: {}]
  %s5 = inlined_call_operand.hbm [shape: bf16[128,128], index: 5, kind: input, shape index: {}]
  %s6 = inlined_call_operand.vmem [shape: f32[1,128], index: 6, kind: input, shape index: {}]
  %s7 = inlined_call_operand.hbm [shape: f32[128,128], index: 7, kind: output, shape index: {}]
  %s8 = sld [smem:[#allocation0]]
  $region54: #{tpu_custom_call.1} parent=0
    _
  %s10 = ssub.s32 1, %s8
  %s11 = scalar_select 0, %s10, %s8
  $region1: #{tpu_custom_call.1} parent=0
    #allocation2 [shape = 'u8[65536]{0}', space=vmem, size = 0x10000, scoped, tag = 'input window, operand 0, single buffered']
    #allocation3 [shape = 's32[1]{0}', space=sflag, size = 0x4, scoped, tag = 'scoped memory for tpu_custom_call.1']
    #allocation4 [shape = 's32[1]{0}', space=sflag, size = 0x4, scoped, tag = 'scoped memory for tpu_custom_call.1']
    #allocation5 [shape = 'u8[65536]{0}', space=vmem, size = 0x10000, scoped, tag = 'input window, operand 1, single buffered']
    #allocation6 [shape = 's32[1]{0}', space=sflag, size = 0x4, scoped, tag = 'scoped memory for tpu_custom_call.1']
    #allocation7 [shape = 'u8[32768]{0}', space=vmem, size = 0x8000, scoped, tag = 'input window, operand 3, single buffered']
    #allocation8 [shape = 'u8[32768]{0}', space=vmem, size = 0x8000, scoped, tag = 'input window, operand 5, single buffered']
    #allocation9 [shape = 's32[1]{0}', space=sflag, size = 0x4, scoped, tag = 'scoped memory for tpu_custom_call.1']
    #allocation10 [shape = 'u8[65536]{0}', space=vmem, size = 0x10000, scoped, tag = 'output window, operand 0, single buffered']
    %12 = vsyncpa [#allocation3], 0
    %13 = vsyncpa [#allocation6], 0
    %14 = vsyncpa [#allocation9], 0
    %15 = vsyncpa [#allocation4], 0
    // Predicated region
    $region2: #{tpu_custom_call.1} parent=1 // pred_check
      _
    $region3: #{tpu_custom_call.1} parent=1 // pred_check_branch
      %17 = sbr.rel (0) target = $region5
    $region4: #{tpu_custom_call.1} parent=1 // pred_region
      %19 = vsyncadd [#allocation3], 0
      %s20 = sshll.u32 %s0, 4
      %s21 = int_to_ptr.hbm [resolvable:$true] %s20
      %s22 = sshll.u32 [#allocation2], 4
      %s23 = int_to_ptr.vmem [resolvable:$true] %s22
      %28 = dma.hbm_to_vmem [thread:$0]  %s21, 2048, %s23, [#allocation3], 128, 128, 8
    $region5: #{tpu_custom_call.1} parent=1 // pred_fallthru
      _
    // Predicated region
    $region6: #{tpu_custom_call.1} parent=1 // pred_check
      _
    $region7: #{tpu_custom_call.1} parent=1 // pred_check_branch
      %30 = sbr.rel (0) target = $region9
    $region8: #{tpu_custom_call.1} parent=1 // pred_region
      %32 = vsyncadd [#allocation6], 0
      %s33 = sshll.u32 %s1, 4
      %s34 = int_to_ptr.hbm [resolvable:$true] %s33
      %s35 = sshll.u32 [#allocation5], 4
      %s36 = int_to_ptr.vmem [resolvable:$true] %s35
      %41 = dma.hbm_to_vmem [thread:$0]  %s34, 2048, %s36, [#allocation6], 64, 64, 4
    $region9: #{tpu_custom_call.1} parent=1 // pred_fallthru
      _
    // Predicated region
    $region10: #{tpu_custom_call.1} parent=1 // pred_check
      _
    $region11: #{tpu_custom_call.1} parent=1 // pred_check_branch
      %43 = sbr.rel (0) target = $region13
    $region12: #{tpu_custom_call.1} parent=1 // pred_region
      _
    $region13: #{tpu_custom_call.1} parent=1 // pred_fallthru
      _
    // Predicated region
    $region14: #{tpu_custom_call.1} parent=1 // pred_check
      _
    $region15: #{tpu_custom_call.1} parent=1 // pred_check_branch
      %45 = sbr.rel (0) target = $region17
    $region16: #{tpu_custom_call.1} parent=1 // pred_region
      %47 = vsyncadd [#allocation6], 0
      %s48 = sshll.u32 %s3, 4
      %s49 = int_to_ptr.hbm [resolvable:$true] %s48
      %s50 = sshll.u32 [#allocation7], 4
      %s51 = int_to_ptr.vmem [resolvable:$true] %s50
      %56 = dma.hbm_to_vmem [thread:$0]  %s49, 1024, %s51, [#allocation6], 64, 64, 4
    $region17: #{tpu_custom_call.1} parent=1 // pred_fallthru
      _
    // Predicated region
    $region18: #{tpu_custom_call.1} parent=1 // pred_check
      _
    $region19: #{tpu_custom_call.1} parent=1 // pred_check_branch
      %58 = sbr.rel (0) target = $region21
    $region20: #{tpu_custom_call.1} parent=1 // pred_region
      _
    $region21: #{tpu_custom_call.1} parent=1 // pred_fallthru
      _
    // Predicated region
    $region22: #{tpu_custom_call.1} parent=1 // pred_check
      _
    $region23: #{tpu_custom_call.1} parent=1 // pred_check_branch
      %60 = sbr.rel (0) target = $region25
    $region24: #{tpu_custom_call.1} parent=1 // pred_region
      %62 = vsyncadd [#allocation9], 0
      %s63 = sshll.u32 %s5, 4
      %s64 = int_to_ptr.hbm [resolvable:$true] %s63
      %s65 = sshll.u32 [#allocation8], 4
      %s66 = int_to_ptr.vmem [resolvable:$true] %s65
      %71 = dma.hbm_to_vmem [thread:$0]  %s64, 1024, %s66, [#allocation9], 64, 64, 4
    $region25: #{tpu_custom_call.1} parent=1 // pred_fallthru
      _
    // Predicated region
    $region26: #{tpu_custom_call.1} parent=1 // pred_check
      _
    $region27: #{tpu_custom_call.1} parent=1 // pred_check_branch
      %73 = sbr.rel (0) target = $region29
    $region28: #{tpu_custom_call.1} parent=1 // pred_region
      _
    $region29: #{tpu_custom_call.1} parent=1 // pred_fallthru
      _
    // Predicated region
    $region30: #{tpu_custom_call.1} parent=1 // pred_check
      _
    $region31: #{tpu_custom_call.1} parent=1 // pred_check_branch
      %75 = sbr.rel (0) target = $region33
    $region32: #{tpu_custom_call.1} parent=1 // pred_region
      %77 = dma.done [#allocation3], 2048
    $region33: #{tpu_custom_call.1} parent=1 // pred_fallthru
      _
    // Predicated region
    $region34: #{tpu_custom_call.1} parent=1 // pred_check
      _
    $region35: #{tpu_custom_call.1} parent=1 // pred_check_branch
      %79 = sbr.rel (0) target = $region37
    $region36: #{tpu_custom_call.1} parent=1 // pred_region
      %81 = dma.done [#allocation6], 2048
    $region37: #{tpu_custom_call.1} parent=1 // pred_fallthru
      _
    // Predicated region
    $region38: #{tpu_custom_call.1} parent=1 // pred_check
      _
    $region39: #{tpu_custom_call.1} parent=1 // pred_check_branch
      %83 = sbr.rel (0) target = $region41
    $region40: #{tpu_custom_call.1} parent=1 // pred_region
      %85 = dma.done [#allocation6], 1024
    $region41: #{tpu_custom_call.1} parent=1 // pred_fallthru
      _
    // Predicated region
    $region42: #{tpu_custom_call.1} parent=1 // pred_check
      _
    $region43: #{tpu_custom_call.1} parent=1 // pred_check_branch
      %87 = sbr.rel (0) target = $region45
    $region44: #{tpu_custom_call.1} parent=1 // pred_region
      %89 = dma.done [#allocation9], 1024
    $region45: #{tpu_custom_call.1} parent=1 // pred_fallthru
      _
    %v90 = vld [vmem:[#allocation2] sm:$0xff]
    %v91 = vld [vmem:[#allocation2 + $0x8] sm:$0xff]
    %v92 = vld [vmem:[#allocation2 + $0x10] sm:$0xff]
    %v93 = vld [vmem:[#allocation2 + $0x18] sm:$0xff]
    %v94 = vld [vmem:[#allocation2 + $0x20] sm:$0xff]
    %v95 = vld [vmem:[#allocation2 + $0x28] sm:$0xff]
    %v96 = vld [vmem:[#allocation2 + $0x30] sm:$0xff]
    %v97 = vld [vmem:[#allocation2 + $0x38] sm:$0xff]
    %v98 = vld [vmem:[#allocation2 + $0x40] sm:$0xff]
    %v99 = vld [vmem:[#allocation2 + $0x48] sm:$0xff]
    %v100 = vld [vmem:[#allocation2 + $0x50] sm:$0xff]
    %v101 = vld [vmem:[#allocation2 + $0x58] sm:$0xff]
    %v102 = vld [vmem:[#allocation2 + $0x60] sm:$0xff]
    %v103 = vld [vmem:[#allocation2 + $0x68] sm:$0xff]
    %v104 = vld [vmem:[#allocation2 + $0x70] sm:$0xff]
    %v105 = vld [vmem:[#allocation2 + $0x78] sm:$0xff]
    %v106 = vld [vmem:[#allocation5] sm:$0xf]
    %v107 = vld [vmem:[#allocation5 + $0x4] sm:$0xf]
    %v108 = vld [vmem:[#allocation5 + $0x8] sm:$0xf]
    %v109 = vld [vmem:[#allocation5 + $0xc] sm:$0xf]
    %v110 = vld [vmem:[#allocation5 + $0x10] sm:$0xf]
    %v111 = vld [vmem:[#allocation5 + $0x14] sm:$0xf]
    %v112 = vld [vmem:[#allocation5 + $0x18] sm:$0xf]
    %v113 = vld [vmem:[#allocation5 + $0x1c] sm:$0xf]
    %v114 = vld [vmem:[#allocation5 + $0x20] sm:$0xf]
    %v115 = vld [vmem:[#allocation5 + $0x24] sm:$0xf]
    %v116 = vld [vmem:[#allocation5 + $0x28] sm:$0xf]
    %v117 = vld [vmem:[#allocation5 + $0x2c] sm:$0xf]
    %v118 = vld [vmem:[#allocation5 + $0x30] sm:$0xf]
    %v119 = vld [vmem:[#allocation5 + $0x34] sm:$0xf]
    %v120 = vld [vmem:[#allocation5 + $0x38] sm:$0xf]
    %v121 = vld [vmem:[#allocation5 + $0x3c] sm:$0xf]
    %v122 = vld [vmem:[#allocation5 + $0x40] sm:$0xf]
    %v123 = vld [vmem:[#allocation5 + $0x44] sm:$0xf]
    %v124 = vld [vmem:[#allocation5 + $0x48] sm:$0xf]
    %v125 = vld [vmem:[#allocation5 + $0x4c] sm:$0xf]
    %v126 = vld [vmem:[#allocation5 + $0x50] sm:$0xf]
    %v127 = vld [vmem:[#allocation5 + $0x54] sm:$0xf]
    %v128 = vld [vmem:[#allocation5 + $0x58] sm:$0xf]
    %v129 = vld [vmem:[#allocation5 + $0x5c] sm:$0xf]
    %v130 = vld [vmem:[#allocation5 + $0x60] sm:$0xf]
    %v131 = vld [vmem:[#allocation5 + $0x64] sm:$0xf]
    %v132 = vld [vmem:[#allocation5 + $0x68] sm:$0xf]
    %v133 = vld [vmem:[#allocation5 + $0x6c] sm:$0xf]
    %v134 = vld [vmem:[#allocation5 + $0x70] sm:$0xf]
    %v135 = vld [vmem:[#allocation5 + $0x74] sm:$0xf]
    %v136 = vld [vmem:[#allocation5 + $0x78] sm:$0xf]
    %v137 = vld [vmem:[#allocation5 + $0x7c] sm:$0xf]
    %v138 = vld [vmem:[%s2] sm:$0x1]
    %v140 = vperm.slane %v138, 0
    %v158 = vunpack.c.l.b16 %v90
    %v159 = vunpack.c.h.b16 %v90
    %v160 = vunpack.c.l.b16 %v91
    %v161 = vunpack.c.h.b16 %v91
    %v162 = vunpack.c.l.b16 %v92
    %v163 = vunpack.c.h.b16 %v92
    %v164 = vunpack.c.l.b16 %v93
    %v165 = vunpack.c.h.b16 %v93
    %v166 = vunpack.c.l.b16 %v94
    %v167 = vunpack.c.h.b16 %v94
    %v168 = vunpack.c.l.b16 %v95
    %v169 = vunpack.c.h.b16 %v95
    %v170 = vunpack.c.l.b16 %v96
    %v171 = vunpack.c.h.b16 %v96
    %v172 = vunpack.c.l.b16 %v97
    %v173 = vunpack.c.h.b16 %v97
    %v174 = vunpack.c.l.b16 %v98
    %v175 = vunpack.c.h.b16 %v98
    %v176 = vunpack.c.l.b16 %v99
    %v177 = vunpack.c.h.b16 %v99
    %v178 = vunpack.c.l.b16 %v100
    %v179 = vunpack.c.h.b16 %v100
    %v180 = vunpack.c.l.b16 %v101
    %v181 = vunpack.c.h.b16 %v101
    %v182 = vunpack.c.l.b16 %v102
    %v183 = vunpack.c.h.b16 %v102
    %v184 = vunpack.c.l.b16 %v103
    %v185 = vunpack.c.h.b16 %v103
    %v186 = vunpack.c.l.b16 %v104
    %v187 = vunpack.c.h.b16 %v104
    %v188 = vunpack.c.l.b16 %v105
    %v189 = vunpack.c.h.b16 %v105
    %v190 = vpack.c.b16 %v160, %v158
    %v191 = vpack.c.b16 %v161, %v159
    %v192 = vpack.c.b16 %v164, %v162
    %v193 = vpack.c.b16 %v165, %v163
    %v194 = vpack.c.b16 %v168, %v166
    %v195 = vpack.c.b16 %v169, %v167
    %v196 = vpack.c.b16 %v172, %v170
    %v197 = vpack.c.b16 %v173, %v171
    %v198 = vpack.c.b16 %v176, %v174
    %v199 = vpack.c.b16 %v177, %v175
    %v200 = vpack.c.b16 %v180, %v178
    %v201 = vpack.c.b16 %v181, %v179
    %v202 = vpack.c.b16 %v184, %v182
    %v203 = vpack.c.b16 %v185, %v183
    %v204 = vpack.c.b16 %v188, %v186
    %v205 = vpack.c.b16 %v189, %v187
    %v254 = vunpack.c.l.b16 %v106
    %v255 = vunpack.c.l.b16 %v107
    %v256 = vunpack.c.l.b16 %v108
    %v257 = vunpack.c.l.b16 %v109
    %v258 = vunpack.c.l.b16 %v110
    %v259 = vunpack.c.l.b16 %v111
    %v260 = vunpack.c.l.b16 %v112
    %v261 = vunpack.c.l.b16 %v113
    %v262 = vunpack.c.l.b16 %v114
    %v263 = vunpack.c.l.b16 %v115
    %v264 = vunpack.c.l.b16 %v116
    %v265 = vunpack.c.l.b16 %v117
    %v266 = vunpack.c.l.b16 %v118
    %v267 = vunpack.c.l.b16 %v119
    %v268 = vunpack.c.l.b16 %v120
    %v269 = vunpack.c.l.b16 %v121
    %v270 = vunpack.c.l.b16 %v122
    %v271 = vunpack.c.l.b16 %v123
    %v272 = vunpack.c.l.b16 %v124
    %v273 = vunpack.c.l.b16 %v125
    %v274 = vunpack.c.l.b16 %v126
    %v275 = vunpack.c.l.b16 %v127
    %v276 = vunpack.c.l.b16 %v128
    %v277 = vunpack.c.l.b16 %v129
    %v278 = vunpack.c.l.b16 %v130
    %v279 = vunpack.c.l.b16 %v131
    %v280 = vunpack.c.l.b16 %v132
    %v281 = vunpack.c.l.b16 %v133
    %v282 = vunpack.c.l.b16 %v134
    %v283 = vunpack.c.l.b16 %v135
    %v284 = vunpack.c.l.b16 %v136
    %v285 = vunpack.c.l.b16 %v137
    %v286 = vpack.c.b16 %v255, %v254
    %v287 = vpack.c.b16 %v257, %v256
    %v288 = vpack.c.b16 %v259, %v258
    %v289 = vpack.c.b16 %v261, %v260
    %v290 = vpack.c.b16 %v263, %v262
    %v291 = vpack.c.b16 %v265, %v264
    %v292 = vpack.c.b16 %v267, %v266
    %v293 = vpack.c.b16 %v269, %v268
    %v294 = vpack.c.b16 %v271, %v270
    %v295 = vpack.c.b16 %v273, %v272
    %v296 = vpack.c.b16 %v275, %v274
    %v297 = vpack.c.b16 %v277, %v276
    %v298 = vpack.c.b16 %v279, %v278
    %v299 = vpack.c.b16 %v281, %v280
    %v300 = vpack.c.b16 %v283, %v282
    %v301 = vpack.c.b16 %v285, %v284
    %318 = vmatpush.bf16.msra.mxu0 %v293
    %319 = vmatpush.bf16.msra.mxu0 %v292
    %320 = vmatpush.bf16.msra.mxu0 %v291
    %321 = vmatpush.bf16.msra.mxu0 %v290
    %322 = vmatpush.bf16.msra.mxu0 %v289
    %323 = vmatpush.bf16.msra.mxu0 %v288
    %324 = vmatpush.bf16.msra.mxu0 %v287
    %325 = vmatpush.bf16.msra.mxu0 %v286
    %326 = vmatmul.bf16.gmra.mxu0 %v190
    %v327 = vpop.f32.mrf.mxu0
    %v328 = vadd.f32 %v140, %v327
    %v329 = vpop.f32.mrf.mxu0
    %v330 = vadd.f32 %v140, %v329
    %331 = vmatmul.bf16.gmra.mxu0 %v192
    %v332 = vpop.f32.mrf.mxu0
    %v333 = vadd.f32 %v140, %v332
    %v334 = vpop.f32.mrf.mxu0
    %v335 = vadd.f32 %v140, %v334
    %336 = vmatmul.bf16.gmra.mxu0 %v194
    %v337 = vpop.f32.mrf.mxu0
    %v338 = vadd.f32 %v140, %v337
    %v339 = vpop.f32.mrf.mxu0
    %v340 = vadd.f32 %v140, %v339
    %341 = vmatmul.bf16.gmra.mxu0 %v196
    %v342 = vpop.f32.mrf.mxu0
    %v343 = vadd.f32 %v140, %v342
    %v344 = vpop.f32.mrf.mxu0
    %v345 = vadd.f32 %v140, %v344
    %346 = vmatmul.bf16.gmra.mxu0 %v198
    %v347 = vpop.f32.mrf.mxu0
    %v348 = vadd.f32 %v140, %v347
    %v349 = vpop.f32.mrf.mxu0
    %v350 = vadd.f32 %v140, %v349
    %351 = vmatmul.bf16.gmra.mxu0 %v200
    %v352 = vpop.f32.mrf.mxu0
    %v353 = vadd.f32 %v140, %v352
    %v354 = vpop.f32.mrf.mxu0
    %v355 = vadd.f32 %v140, %v354
    %356 = vmatmul.bf16.gmra.mxu0 %v202
    %v357 = vpop.f32.mrf.mxu0
    %v358 = vadd.f32 %v140, %v357
    %v359 = vpop.f32.mrf.mxu0
    %v360 = vadd.f32 %v140, %v359
    %361 = vmatmul.bf16.gmra.mxu0 %v204
    %v362 = vpop.f32.mrf.mxu0
    %v363 = vadd.f32 %v140, %v362
    %v364 = vpop.f32.mrf.mxu0
    %v365 = vadd.f32 %v140, %v364
    %366 = vdwg.mxu0
    %367 = vmatpush.bf16.msra.mxu0 %v301
    %368 = vmatpush.bf16.msra.mxu0 %v300
    %369 = vmatpush.bf16.msra.mxu0 %v299
    %370 = vmatpush.bf16.msra.mxu0 %v298
    %371 = vmatpush.bf16.msra.mxu0 %v297
    %372 = vmatpush.bf16.msra.mxu0 %v296
    %373 = vmatpush.bf16.msra.mxu0 %v295
    %374 = vmatpush.bf16.msra.mxu0 %v294
    %375 = vmatmul.bf16.gmra.mxu0 %v191
    %v376 = vpop.f32.mrf.mxu0
    %v377 = vadd.f32 %v328, %v376
    %v378 = vpop.f32.mrf.mxu0
    %v379 = vadd.f32 %v330, %v378
    %380 = vmatmul.bf16.gmra.mxu0 %v193
    %v381 = vpop.f32.mrf.mxu0
    %v382 = vadd.f32 %v333, %v381
    %v383 = vpop.f32.mrf.mxu0
    %v384 = vadd.f32 %v335, %v383
    %385 = vmatmul.bf16.gmra.mxu0 %v195
    %v386 = vpop.f32.mrf.mxu0
    %v387 = vadd.f32 %v338, %v386
    %v388 = vpop.f32.mrf.mxu0
    %v389 = vadd.f32 %v340, %v388
    %390 = vmatmul.bf16.gmra.mxu0 %v197
    %v391 = vpop.f32.mrf.mxu0
    %v392 = vadd.f32 %v343, %v391
    %v393 = vpop.f32.mrf.mxu0
    %v394 = vadd.f32 %v345, %v393
    %395 = vmatmul.bf16.gmra.mxu0 %v199
    %v396 = vpop.f32.mrf.mxu0
    %v397 = vadd.f32 %v348, %v396
    %v398 = vpop.f32.mrf.mxu0
    %v399 = vadd.f32 %v350, %v398
    %400 = vmatmul.bf16.gmra.mxu0 %v201
    %v401 = vpop.f32.mrf.mxu0
    %v402 = vadd.f32 %v353, %v401
    %v403 = vpop.f32.mrf.mxu0
    %v404 = vadd.f32 %v355, %v403
    %405 = vmatmul.bf16.gmra.mxu0 %v203
    %v406 = vpop.f32.mrf.mxu0
    %v407 = vadd.f32 %v358, %v406
    %v408 = vpop.f32.mrf.mxu0
    %v409 = vadd.f32 %v360, %v408
    %410 = vmatmul.bf16.gmra.mxu0 %v205
    %v411 = vpop.f32.mrf.mxu0
    %v412 = vadd.f32 %v363, %v411
    %v413 = vpop.f32.mrf.mxu0
    %v414 = vadd.f32 %v365, %v413
    %415 = vdwg.mxu0
    %v416 = vmax.f32 %v377, 0.0
    %v417 = vmax.f32 %v379, 0.0
    %v418 = vmax.f32 %v382, 0.0
    %v419 = vmax.f32 %v384, 0.0
    %v420 = vmax.f32 %v387, 0.0
    %v421 = vmax.f32 %v389, 0.0
    %v422 = vmax.f32 %v392, 0.0
    %v423 = vmax.f32 %v394, 0.0
    %v424 = vmax.f32 %v397, 0.0
    %v425 = vmax.f32 %v399, 0.0
    %v426 = vmax.f32 %v402, 0.0
    %v427 = vmax.f32 %v404, 0.0
    %v428 = vmax.f32 %v407, 0.0
    %v429 = vmax.f32 %v409, 0.0
    %v430 = vmax.f32 %v412, 0.0
    %v431 = vmax.f32 %v414, 0.0
    %v432 = vpack.c.bf16 %v417, %v416
    %v433 = vpack.c.bf16 %v419, %v418
    %v434 = vpack.c.bf16 %v421, %v420
    %v435 = vpack.c.bf16 %v423, %v422
    %v436 = vpack.c.bf16 %v425, %v424
    %v437 = vpack.c.bf16 %v427, %v426
    %v438 = vpack.c.bf16 %v429, %v428
    %v439 = vpack.c.bf16 %v431, %v430
    %v440 = vld [vmem:[#allocation7] sm:$0xf]
    %v441 = vld [vmem:[#allocation7 + $0x4] sm:$0xf]
    %v442 = vld [vmem:[#allocation7 + $0x8] sm:$0xf]
    %v443 = vld [vmem:[#allocation7 + $0xc] sm:$0xf]
    %v444 = vld [vmem:[#allocation7 + $0x10] sm:$0xf]
    %v445 = vld [vmem:[#allocation7 + $0x14] sm:$0xf]
    %v446 = vld [vmem:[#allocation7 + $0x18] sm:$0xf]
    %v447 = vld [vmem:[#allocation7 + $0x1c] sm:$0xf]
    %v448 = vld [vmem:[#allocation7 + $0x20] sm:$0xf]
    %v449 = vld [vmem:[#allocation7 + $0x24] sm:$0xf]
    %v450 = vld [vmem:[#allocation7 + $0x28] sm:$0xf]
    %v451 = vld [vmem:[#allocation7 + $0x2c] sm:$0xf]
    %v452 = vld [vmem:[#allocation7 + $0x30] sm:$0xf]
    %v453 = vld [vmem:[#allocation7 + $0x34] sm:$0xf]
    %v454 = vld [vmem:[#allocation7 + $0x38] sm:$0xf]
    %v455 = vld [vmem:[#allocation7 + $0x3c] sm:$0xf]
    %v456 = vld [vmem:[%s4] sm:$0x1]
    %v458 = vperm.slane %v456, 0
    %v476 = vunpack.c.l.b16 %v440
    %v477 = vunpack.c.l.b16 %v441
    %v478 = vunpack.c.l.b16 %v442
    %v479 = vunpack.c.l.b16 %v443
    %v480 = vunpack.c.l.b16 %v444
    %v481 = vunpack.c.l.b16 %v445
    %v482 = vunpack.c.l.b16 %v446
    %v483 = vunpack.c.l.b16 %v447
    %v484 = vunpack.c.l.b16 %v448
    %v485 = vunpack.c.l.b16 %v449
    %v486 = vunpack.c.l.b16 %v450
    %v487 = vunpack.c.l.b16 %v451
    %v488 = vunpack.c.l.b16 %v452
    %v489 = vunpack.c.l.b16 %v453
    %v490 = vunpack.c.l.b16 %v454
    %v491 = vunpack.c.l.b16 %v455
    %v492 = vpack.c.b16 %v477, %v476
    %v493 = vpack.c.b16 %v479, %v478
    %v494 = vpack.c.b16 %v481, %v480
    %v495 = vpack.c.b16 %v483, %v482
    %v496 = vpack.c.b16 %v485, %v484
    %v497 = vpack.c.b16 %v487, %v486
    %v498 = vpack.c.b16 %v489, %v488
    %v499 = vpack.c.b16 %v491, %v490
    %508 = vmatpush.bf16.msra.mxu0 %v499
    %509 = vmatpush.bf16.msra.mxu0 %v498
    %510 = vmatpush.bf16.msra.mxu0 %v497
    %511 = vmatpush.bf16.msra.mxu0 %v496
    %512 = vmatpush.bf16.msra.mxu0 %v495
    %513 = vmatpush.bf16.msra.mxu0 %v494
    %514 = vmatpush.bf16.msra.mxu0 %v493
    %515 = vmatpush.bf16.msra.mxu0 %v492
    %516 = vmatmul.bf16.gmra.mxu0 %v432
    %v517 = vpop.f32.mrf.mxu0
    %v518 = vadd.f32 %v458, %v517
    %v519 = vpop.f32.mrf.mxu0
    %v520 = vadd.f32 %v458, %v519
    %521 = vmatmul.bf16.gmra.mxu0 %v433
    %v522 = vpop.f32.mrf.mxu0
    %v523 = vadd.f32 %v458, %v522
    %v524 = vpop.f32.mrf.mxu0
    %v525 = vadd.f32 %v458, %v524
    %526 = vmatmul.bf16.gmra.mxu0 %v434
    %v527 = vpop.f32.mrf.mxu0
    %v528 = vadd.f32 %v458, %v527
    %v529 = vpop.f32.mrf.mxu0
    %v530 = vadd.f32 %v458, %v529
    %531 = vmatmul.bf16.gmra.mxu0 %v435
    %v532 = vpop.f32.mrf.mxu0
    %v533 = vadd.f32 %v458, %v532
    %v534 = vpop.f32.mrf.mxu0
    %v535 = vadd.f32 %v458, %v534
    %536 = vmatmul.bf16.gmra.mxu0 %v436
    %v537 = vpop.f32.mrf.mxu0
    %v538 = vadd.f32 %v458, %v537
    %v539 = vpop.f32.mrf.mxu0
    %v540 = vadd.f32 %v458, %v539
    %541 = vmatmul.bf16.gmra.mxu0 %v437
    %v542 = vpop.f32.mrf.mxu0
    %v543 = vadd.f32 %v458, %v542
    %v544 = vpop.f32.mrf.mxu0
    %v545 = vadd.f32 %v458, %v544
    %546 = vmatmul.bf16.gmra.mxu0 %v438
    %v547 = vpop.f32.mrf.mxu0
    %v548 = vadd.f32 %v458, %v547
    %v549 = vpop.f32.mrf.mxu0
    %v550 = vadd.f32 %v458, %v549
    %551 = vmatmul.bf16.gmra.mxu0 %v439
    %v552 = vpop.f32.mrf.mxu0
    %v553 = vadd.f32 %v458, %v552
    %v554 = vpop.f32.mrf.mxu0
    %v555 = vadd.f32 %v458, %v554
    %556 = vdwg.mxu0
    %v557 = vmax.f32 %v518, 0.0
    %v558 = vmax.f32 %v520, 0.0
    %v559 = vmax.f32 %v523, 0.0
    %v560 = vmax.f32 %v525, 0.0
    %v561 = vmax.f32 %v528, 0.0
    %v562 = vmax.f32 %v530, 0.0
    %v563 = vmax.f32 %v533, 0.0
    %v564 = vmax.f32 %v535, 0.0
    %v565 = vmax.f32 %v538, 0.0
    %v566 = vmax.f32 %v540, 0.0
    %v567 = vmax.f32 %v543, 0.0
    %v568 = vmax.f32 %v545, 0.0
    %v569 = vmax.f32 %v548, 0.0
    %v570 = vmax.f32 %v550, 0.0
    %v571 = vmax.f32 %v553, 0.0
    %v572 = vmax.f32 %v555, 0.0
    %v573 = vpack.c.bf16 %v558, %v557
    %v574 = vpack.c.bf16 %v560, %v559
    %v575 = vpack.c.bf16 %v562, %v561
    %v576 = vpack.c.bf16 %v564, %v563
    %v577 = vpack.c.bf16 %v566, %v565
    %v578 = vpack.c.bf16 %v568, %v567
    %v579 = vpack.c.bf16 %v570, %v569
    %v580 = vpack.c.bf16 %v572, %v571
    %v581 = vld [vmem:[#allocation8] sm:$0xf]
    %v582 = vld [vmem:[#allocation8 + $0x4] sm:$0xf]
    %v583 = vld [vmem:[#allocation8 + $0x8] sm:$0xf]
    %v584 = vld [vmem:[#allocation8 + $0xc] sm:$0xf]
    %v585 = vld [vmem:[#allocation8 + $0x10] sm:$0xf]
    %v586 = vld [vmem:[#allocation8 + $0x14] sm:$0xf]
    %v587 = vld [vmem:[#allocation8 + $0x18] sm:$0xf]
    %v588 = vld [vmem:[#allocation8 + $0x1c] sm:$0xf]
    %v589 = vld [vmem:[#allocation8 + $0x20] sm:$0xf]
    %v590 = vld [vmem:[#allocation8 + $0x24] sm:$0xf]
    %v591 = vld [vmem:[#allocation8 + $0x28] sm:$0xf]
    %v592 = vld [vmem:[#allocation8 + $0x2c] sm:$0xf]
    %v593 = vld [vmem:[#allocation8 + $0x30] sm:$0xf]
    %v594 = vld [vmem:[#allocation8 + $0x34] sm:$0xf]
    %v595 = vld [vmem:[#allocation8 + $0x38] sm:$0xf]
    %v596 = vld [vmem:[#allocation8 + $0x3c] sm:$0xf]
    %v597 = vld [vmem:[%s6] sm:$0x1]
    %v599 = vperm.slane %v597, 0
    %v617 = vunpack.c.l.b16 %v581
    %v618 = vunpack.c.l.b16 %v582
    %v619 = vunpack.c.l.b16 %v583
    %v620 = vunpack.c.l.b16 %v584
    %v621 = vunpack.c.l.b16 %v585
    %v622 = vunpack.c.l.b16 %v586
    %v623 = vunpack.c.l.b16 %v587
    %v624 = vunpack.c.l.b16 %v588
    %v625 = vunpack.c.l.b16 %v589
    %v626 = vunpack.c.l.b16 %v590
    %v627 = vunpack.c.l.b16 %v591
    %v628 = vunpack.c.l.b16 %v592
    %v629 = vunpack.c.l.b16 %v593
    %v630 = vunpack.c.l.b16 %v594
    %v631 = vunpack.c.l.b16 %v595
    %v632 = vunpack.c.l.b16 %v596
    %v633 = vpack.c.b16 %v618, %v617
    %v634 = vpack.c.b16 %v620, %v619
    %v635 = vpack.c.b16 %v622, %v621
    %v636 = vpack.c.b16 %v624, %v623
    %v637 = vpack.c.b16 %v626, %v625
    %v638 = vpack.c.b16 %v628, %v627
    %v639 = vpack.c.b16 %v630, %v629
    %v640 = vpack.c.b16 %v632, %v631
    %649 = vmatpush.bf16.msra.mxu0 %v640
    %650 = vmatpush.bf16.msra.mxu0 %v639
    %651 = vmatpush.bf16.msra.mxu0 %v638
    %652 = vmatpush.bf16.msra.mxu0 %v637
    %653 = vmatpush.bf16.msra.mxu0 %v636
    %654 = vmatpush.bf16.msra.mxu0 %v635
    %655 = vmatpush.bf16.msra.mxu0 %v634
    %656 = vmatpush.bf16.msra.mxu0 %v633
    %657 = vmatmul.bf16.gmra.mxu0 %v573
    %v658 = vpop.f32.mrf.mxu0
    %v659 = vadd.f32 %v599, %v658
    %v660 = vpop.f32.mrf.mxu0
    %v661 = vadd.f32 %v599, %v660
    %662 = vmatmul.bf16.gmra.mxu0 %v574
    %v663 = vpop.f32.mrf.mxu0
    %v664 = vadd.f32 %v599, %v663
    %v665 = vpop.f32.mrf.mxu0
    %v666 = vadd.f32 %v599, %v665
    %667 = vmatmul.bf16.gmra.mxu0 %v575
    %v668 = vpop.f32.mrf.mxu0
    %v669 = vadd.f32 %v599, %v668
    %v670 = vpop.f32.mrf.mxu0
    %v671 = vadd.f32 %v599, %v670
    %672 = vmatmul.bf16.gmra.mxu0 %v576
    %v673 = vpop.f32.mrf.mxu0
    %v674 = vadd.f32 %v599, %v673
    %v675 = vpop.f32.mrf.mxu0
    %v676 = vadd.f32 %v599, %v675
    %677 = vmatmul.bf16.gmra.mxu0 %v577
    %v678 = vpop.f32.mrf.mxu0
    %v679 = vadd.f32 %v599, %v678
    %v680 = vpop.f32.mrf.mxu0
    %v681 = vadd.f32 %v599, %v680
    %682 = vmatmul.bf16.gmra.mxu0 %v578
    %v683 = vpop.f32.mrf.mxu0
    %v684 = vadd.f32 %v599, %v683
    %v685 = vpop.f32.mrf.mxu0
    %v686 = vadd.f32 %v599, %v685
    %687 = vmatmul.bf16.gmra.mxu0 %v579
    %v688 = vpop.f32.mrf.mxu0
    %v689 = vadd.f32 %v599, %v688
    %v690 = vpop.f32.mrf.mxu0
    %v691 = vadd.f32 %v599, %v690
    %692 = vmatmul.bf16.gmra.mxu0 %v580
    %v693 = vpop.f32.mrf.mxu0
    %v694 = vadd.f32 %v599, %v693
    %v695 = vpop.f32.mrf.mxu0
    %v696 = vadd.f32 %v599, %v695
    %697 = vdwg.mxu0
    %698 = vst [vmem:[#allocation10] sm:$0xff] %v659
    %699 = vst [vmem:[#allocation10 + $0x8] sm:$0xff] %v661
    %700 = vst [vmem:[#allocation10 + $0x10] sm:$0xff] %v664
    %701 = vst [vmem:[#allocation10 + $0x18] sm:$0xff] %v666
    %702 = vst [vmem:[#allocation10 + $0x20] sm:$0xff] %v669
    %703 = vst [vmem:[#allocation10 + $0x28] sm:$0xff] %v671
    %704 = vst [vmem:[#allocation10 + $0x30] sm:$0xff] %v674
    %705 = vst [vmem:[#allocation10 + $0x38] sm:$0xff] %v676
    %706 = vst [vmem:[#allocation10 + $0x40] sm:$0xff] %v679
    %707 = vst [vmem:[#allocation10 + $0x48] sm:$0xff] %v681
    %708 = vst [vmem:[#allocation10 + $0x50] sm:$0xff] %v684
    %709 = vst [vmem:[#allocation10 + $0x58] sm:$0xff] %v686
    %710 = vst [vmem:[#allocation10 + $0x60] sm:$0xff] %v689
    %711 = vst [vmem:[#allocation10 + $0x68] sm:$0xff] %v691
    %712 = vst [vmem:[#allocation10 + $0x70] sm:$0xff] %v694
    %713 = vst [vmem:[#allocation10 + $0x78] sm:$0xff] %v696
    // Predicated region
    $region46: #{tpu_custom_call.1} parent=1 // pred_check
      _
    $region47: #{tpu_custom_call.1} parent=1 // pred_check_branch
      %715 = sbr.rel (0) target = $region49
    $region48: #{tpu_custom_call.1} parent=1 // pred_region
      %717 = vsyncadd [#allocation4], 0
      %s718 = sshll.u32 [#allocation10], 4
      %s719 = int_to_ptr.vmem [resolvable:$true] %s718
      %s720 = sshll.u32 %s7, 4
      %s721 = int_to_ptr.hbm [resolvable:$true] %s720
      %726 = dma.vmem_to_hbm [thread:$0]  %s719, 2048, %s721, [#allocation4], 128, 128, 8
    $region49: #{tpu_custom_call.1} parent=1 // pred_fallthru
      _
    // Predicated region
    $region50: #{tpu_custom_call.1} parent=1 // pred_check
      _
    $region51: #{tpu_custom_call.1} parent=1 // pred_check_branch
      %728 = sbr.rel (0) target = $region53
    $region52: #{tpu_custom_call.1} parent=1 // pred_region
      %730 = dma.done [#allocation4], 2048
    $region53: #{tpu_custom_call.1} parent=1 // pred_fallthru
      _
    %731 = vsyncpa [#allocation3], 1
    %732 = vsyncpa [#allocation6], 1
    %733 = vsyncpa [#allocation9], 1
    %734 = vsyncpa [#allocation4], 1

</llo_original>
